<compile_context>
chip_gen: v5e
topology: v5e:2x2
jax: 0.10.0
libtpu: 0.0.40
codegen_flags: <defaults>
</compile_context>

<pallas_src>
import functools

import jax
import jax.numpy as jnp
from jax.experimental import pallas as pl
from jax.experimental.pallas import tpu as pltpu


# ----------------------------------------------------------------------------
# Tiling helpers
# ----------------------------------------------------------------------------
def _pick_v_tile(V, cap=2048):
    """Largest power-of-two tile <= cap that divides V (multiple of 128), else V."""
    t = min(cap, 2048)
    while t >= 128:
        if V % t == 0:
            return t
        t //= 2
    return V          # full vocab as one block (legal: equals the array dim)


def _pick_batches_per_tile(B, T, target_rows=256):
    """Whole batches per row tile.  Must divide B, and either G == B or G is a
    multiple of 8 (so the (G, S) enc block and (G*T, D) row block satisfy the
    (8, 128) sublane rule)."""
    want = max(1, min(B, max(1, target_rows // max(T, 1))))
    for g in range(want, 0, -1):
        if B % g == 0 and (g == B or (g % 8 == 0 and (g * T) % 8 == 0)):
            return g
    return B


def _pick_row_tile(rows, target=256):
    t = min(target, 256)
    while t >= 8:
        if rows % t == 0:
            return t
        t //= 2
    return rows


# ----------------------------------------------------------------------------
# Kernels
# ----------------------------------------------------------------------------
def _pointer_gen_kernel(x_ref, wp_ref, bp_ref, wg_ref, bg_ref, attn_ref, enc_ref,
                        logit_ref, alpha_ref,
                        m_s, l_s, alpha_s, attn_s, xb_s,
                        *, inv_temp):
    phase = pl.program_id(1)          # 0: accumulate softmax stats, 1: emit
    v_idx = pl.program_id(2)          # vocab tile

    TR = x_ref.shape[0]               # rows in this tile (= G * T)
    TV = logit_ref.shape[1]           # vocab tile width
    S = attn_ref.shape[1]             # source length
    G = enc_ref.shape[0]              # whole batches in this row tile
    T = TR // G                       # decoder steps per batch

    # ---- once per row tile: gate, attention softmax, scaled bf16 x, init ----
    @pl.when(jnp.logical_and(phase == 0, v_idx == 0))
    def _init():
        x = x_ref[...]                                              # [TR, D] f32
        # p_gen: [D] -> 1 projection on the VPU/XLU (an MXU matmul with N=1
        # would waste a full pass); stays f32 end to end.
        pg = jnp.sum(x * wg_ref[...], axis=-1, keepdims=True) + bg_ref[...]
        alpha = jax.nn.sigmoid(pg)                                  # [TR, 1]
        alpha_s[...] = alpha
        alpha_ref[...] = alpha        # written once; block resident over (phase, v)

        # temp-scaled bf16 copy of x, reused by every (phase, v) matmul so the
        # inner loop never re-casts / re-scales the f32 block.
        if inv_temp != 1.0:
            xb_s[...] = (x * inv_temp).astype(xb_s.dtype)
        else:
            xb_s[...] = x.astype(xb_s.dtype)

        a = attn_ref[...]
        if inv_temp != 1.0:
            a = a * inv_temp
        a = a - jnp.max(a, axis=-1, keepdims=True)
        ea = jnp.exp(a)
        inv_den = pl.reciprocal(jnp.sum(ea, axis=-1, keepdims=True), approx=True)
        attn_s[...] = (1.0 - alpha) * (ea * inv_den)                # [TR, S]

        m_s[...] = jnp.full(m_s.shape, -jnp.inf, dtype=m_s.dtype)
        l_s[...] = jnp.zeros(l_s.shape, dtype=l_s.dtype)

    # ---- logits for the current V tile (needed by both phases) -------------
    b = bp_ref[...]
    if inv_temp != 1.0:
        b = b * inv_temp
    z = jnp.dot(xb_s[...], wp_ref[...],
                preferred_element_type=jnp.float32) + b             # [TR, TV] f32

    # ---- phase 0: accumulate the global softmax max / sum over V -----------
    @pl.when(phase == 0)
    def _stats():
        m_prev = m_s[...]
        m_new = jnp.maximum(m_prev, jnp.max(z, axis=-1, keepdims=True))
        l_s[...] = (l_s[...] * jnp.exp(m_prev - m_new)
                    + jnp.sum(jnp.exp(z - m_new), axis=-1, keepdims=True))
        m_s[...] = m_new

    # ---- phase 1: emit log(alpha * softmax(z) + scatter_add(attn)) ---------
    @pl.when(phase == 1)
    def _emit():
        # softmax(z) = exp(z - (m + log l)): denominator folded into the
        # exponent -> only the alpha multiply touches the full [TR, TV] tile.
        # (l >= 1 because the running max term contributes exp(0), so log l is
        #  finite and >= 0.)
        shift = m_s[...] + jnp.log(l_s[...])                         # [TR, 1]
        gen_part = alpha_s[...] * jnp.exp(z - shift)                 # [TR, TV]

        v_off = v_idx * TV
        col_iota = jax.lax.broadcasted_iota(jnp.int32, (TV, S), 0) + v_off
        for g in range(G):                        # static unroll over batches
            enc_row = enc_ref[pl.ds(g, 1), :]                        # [1, S]
            onehot_vs = (col_iota == enc_row).astype(jnp.bfloat16)   # [TV, S]
            attn_g = attn_s[pl.ds(g * T, T), :].astype(jnp.bfloat16) # [T, S]
            # scattered[t, c] = sum_s attn_g[t, s] * [enc[s] == c + v_off]
            # (A @ B^T form; MXU-native, same pattern as flash-attn QK^T)
            scattered = jax.lax.dot_general(
                attn_g, onehot_vs,
                dimension_numbers=(((1,), (1,)), ((), ())),
                preferred_element_type=jnp.float32)                  # [T, TV]
            logit_ref[pl.ds(g * T, T), :] = jnp.log(
                gen_part[g * T:(g + 1) * T, :] + scattered)


def _log_softmax_kernel(x_ref, wp_ref, bp_ref, out_ref, m_s, l_s, xb_s):
    phase = pl.program_id(1)
    v_idx = pl.program_id(2)

    @pl.when(jnp.logical_and(phase == 0, v_idx == 0))
    def _init():
        xb_s[...] = x_ref[...].astype(xb_s.dtype)   # cast once per row tile
        m_s[...] = jnp.full(m_s.shape, -jnp.inf, dtype=m_s.dtype)
        l_s[...] = jnp.zeros(l_s.shape, dtype=l_s.dtype)

    z = jnp.dot(xb_s[...], wp_ref[...],
                preferred_element_type=jnp.float32) + bp_ref[...]

    @pl.when(phase == 0)
    def _stats():
        m_prev = m_s[...]
        m_new = jnp.maximum(m_prev, jnp.max(z, axis=-1, keepdims=True))
        l_s[...] = (l_s[...] * jnp.exp(m_prev - m_new)
                    + jnp.sum(jnp.exp(z - m_new), axis=-1, keepdims=True))
        m_s[...] = m_new

    @pl.when(phase == 1)
    def _emit():
        out_ref[...] = z - m_s[...] - jnp.log(l_s[...])


# ----------------------------------------------------------------------------
# Module wrapper
# ----------------------------------------------------------------------------
class GeneratorPallas:
    """Linear + softmax generation step (pointer-generator variant)."""

    def __init__(self, d_model, vocab, hidden_dim, pointer_gen=True, key=None,
                 max_v_tile=2048, max_rows_per_tile=256):
        if key is None:
            key = jax.random.PRNGKey(0)
        k1, k2, k3, k4 = jax.random.split(key, 4)
        bound_p = 1.0 / (d_model ** 0.5)
        bound_g = 1.0 / (hidden_dim ** 0.5)
        # proj: nn.Linear(d_model, vocab) -> W stored [D, V] in bf16 (halves the
        # dominant HBM weight stream; accumulation stays f32 on the MXU).
        self.wp = jax.random.uniform(k1, (d_model, vocab), jnp.float32,
                                     -bound_p, bound_p).astype(jnp.bfloat16)
        self.bp = jax.random.uniform(k2, (1, vocab), jnp.float32,
                                     -bound_p, bound_p)
        # p_gen_linear: nn.Linear(hidden_dim, 1) -> stored as a [1, D] row so the
        # kernel can use a VPU multiply + lane reduction.
        self.wg = jax.random.uniform(k3, (1, hidden_dim), jnp.float32,
                                     -bound_g, bound_g)
        self.bg = jax.random.uniform(k4, (1, 1), jnp.float32,
                                     -bound_g, bound_g)
        self.pointer_gen = pointer_gen
        self.d_model = d_model
        self.vocab = vocab
        self.max_v_tile = max_v_tile
        self.max_rows_per_tile = max_rows_per_tile

    def __call__(self, x, attn_dist=None, enc_batch_extend_vocab=None,
                 extra_zeros=None, temp=1, beam_search=False,
                 attn_dist_db=None):
        B, T, D = x.shape
        V = self.vocab
        BT = B * T
        TV = _pick_v_tile(V, self.max_v_tile)
        NV = V // TV

        cparams = pltpu.CompilerParams(
            dimension_semantics=("parallel", "arbitrary", "arbitrary"),
            vmem_limit_bytes=48 * 1024 * 1024)   # fits v7x (64 MiB) and below

        if not self.pointer_gen:
            # return F.log_softmax(self.proj(x), dim=-1), two-pass over V tiles
            TR = _pick_row_tile(BT, self.max_rows_per_tile)
            R = BT // TR
            x2d = x.reshape(BT, D)
            out = pl.pallas_call(
                _log_softmax_kernel,
                out_shape=jax.ShapeDtypeStruct((BT, V), jnp.float32),
                grid_spec=pltpu.PrefetchScalarGridSpec(
                    num_scalar_prefetch=0,
                    grid=(R, 2, NV),
                    in_specs=[
                        pl.BlockSpec((TR, D), lambda r, p, v: (r, 0)),
                        pl.BlockSpec((D, TV), lambda r, p, v: (0, v)),
                        pl.BlockSpec((1, TV), lambda r, p, v: (0, v)),
                    ],
                    out_specs=pl.BlockSpec((TR, TV), lambda r, p, v: (r, v * p)),
                    scratch_shapes=[pltpu.VMEM((TR, 1), jnp.float32),
                                    pltpu.VMEM((TR, 1), jnp.float32),
                                    pltpu.VMEM((TR, D), jnp.bfloat16)]),
                compiler_params=cparams,
            )(x2d, self.wp, self.bp)
            return out.reshape(B, T, V)

        S = attn_dist.shape[-1]
        enc = enc_batch_extend_vocab.astype(jnp.int32)
        if beam_search:
            # torch: repeat row 0 of the extended-vocab indices across batch
            enc = jnp.broadcast_to(enc[0:1], enc.shape)
        # TODO(synk): `extra_zeros` / `attn_dist_db` are accepted but unused,
        # matching the given PyTorch forward (it never concatenates extra_zeros).

        G = _pick_batches_per_tile(B, T, self.max_rows_per_tile)  # batches per tile
        TR = G * T
        R = B // G

        x2d = x.reshape(BT, D)
        attn2d = attn_dist.reshape(BT, S)

        kernel = functools.partial(_pointer_gen_kernel,
                                   inv_temp=float(1.0 / temp))
        logit, alpha = pl.pallas_call(
            kernel,
            out_shape=(jax.ShapeDtypeStruct((BT, V), jnp.float32),
                       jax.ShapeDtypeStruct((BT, 1), jnp.float32)),
            grid_spec=pltpu.PrefetchScalarGridSpec(
                num_scalar_prefetch=0,
                grid=(R, 2, NV),
                in_specs=[
                    pl.BlockSpec((TR, D), lambda r, p, v: (r, 0)),   # x rows
                    pl.BlockSpec((D, TV), lambda r, p, v: (0, v)),   # W_proj (bf16)
                    pl.BlockSpec((1, TV), lambda r, p, v: (0, v)),   # b_proj
                    pl.BlockSpec((1, D), lambda r, p, v: (0, 0)),    # W_pgen row
                    pl.BlockSpec((1, 1), lambda r, p, v: (0, 0)),    # b_pgen
                    pl.BlockSpec((TR, S), lambda r, p, v: (r, 0)),   # attn scores
                    pl.BlockSpec((G, S), lambda r, p, v: (r, 0)),    # enc vocab ids
                ],
                out_specs=[
                    # `v * p`: the output block stays parked during the stats
                    # phase (p == 0) and is only written back once phase 1 has
                    # filled it -> no revisits, no wasted HBM writes.
                    pl.BlockSpec((TR, TV), lambda r, p, v: (r, v * p)),
                    pl.BlockSpec((TR, 1), lambda r, p, v: (r, 0)),
                ],
                scratch_shapes=[
                    pltpu.VMEM((TR, 1), jnp.float32),   # running max
                    pltpu.VMEM((TR, 1), jnp.float32),   # running sum
                    pltpu.VMEM((TR, 1), jnp.float32),   # alpha (gate)
                    pltpu.VMEM((TR, S), jnp.float32),   # (1-alpha)*softmax(attn)
                    pltpu.VMEM((TR, D), jnp.bfloat16),  # temp-scaled bf16 x
                ]),
            compiler_params=cparams,
        )(x2d, self.wp, self.bp, self.wg, self.bg, attn2d, enc)
        return logit.reshape(B, T, V), alpha.reshape(B, T, 1)


# ----------------------------------------------------------------------------
# Pure-JAX references (mirror the PyTorch forward, f32) for correctness checks.
# ----------------------------------------------------------------------------
def _reference(gen, x, attn_dist, enc, temp=1.0):
    wp = gen.wp.astype(jnp.float32)
    p_gen = jnp.sum(x * gen.wg[0], axis=-1, keepdims=True) + gen.bg[0, 0]
    alpha = jax.nn.sigmoid(p_gen)
    logit = jnp.einsum('btd,dv->btv', x, wp,
                       precision=jax.lax.Precision.HIGHEST) + gen.bp[0]
    vocab_dist = jax.nn.softmax(logit / temp, axis=-1)
    vocab_dist_ = alpha * vocab_dist
    attn_sm = jax.nn.softmax(attn_dist / temp, axis=-1)
    attn_ = (1.0 - alpha) * attn_sm
    onehot = jax.nn.one_hot(enc, gen.vocab, dtype=jnp.float32)      # [B, S, V]
    scattered = jnp.einsum('bts,bsv->btv', attn_, onehot)
    return jnp.log(vocab_dist_ + scattered), alpha


def _reference_log_softmax(gen, x):
    logit = jnp.einsum('btd,dv->btv', x, gen.wp.astype(jnp.float32),
                       precision=jax.lax.Precision.HIGHEST) + gen.bp[0]
    return jax.nn.log_softmax(logit, axis=-1)


if __name__ == "__main__":
    keys = jax.random.split(jax.random.PRNGKey(0), 8)

    # ---- case 1: tiny shapes, single V tile, single row tile ----------------
    B, T, D, V, S = 2, 8, 32, 64, 16
    x = jax.random.normal(keys[0], (B, T, D), dtype=jnp.float32)
    attn_dist = jax.random.normal(keys[1], (B, T, S), dtype=jnp.float32)
    enc_ids = jax.random.randint(keys[2], (B, S), 0, V, dtype=jnp.int32)

    gen = GeneratorPallas(d_model=D, vocab=V, hidden_dim=D,
                          pointer_gen=True, key=keys[3])
    logit, alpha = gen(x, attn_dist=attn_dist, enc_batch_extend_vocab=enc_ids,
                       temp=1, beam_search=False)
    logit = jax.block_until_ready(logit)
    alpha = jax.block_until_ready(alpha)
    ref_logit, ref_alpha = _reference(gen, x, attn_dist, enc_ids, temp=1.0)
    assert logit.shape == (B, T, V) and alpha.shape == (B, T, 1)
    assert jnp.allclose(alpha, ref_alpha, atol=1e-5, rtol=1e-5)
    # projection matmul runs in bf16 inside the kernel -> tolerances reflect that
    assert jnp.allclose(logit, ref_logit, atol=3e-2, rtol=3e-2)

    # non-pointer-gen path (plain tiled log_softmax head)
    gen_np = GeneratorPallas(d_model=D, vocab=V, hidden_dim=D,
                             pointer_gen=False, key=keys[3])
    lsm = jax.block_until_ready(gen_np(x))
    ref_lsm = _reference_log_softmax(gen_np, x)
    assert jnp.allclose(lsm, ref_lsm, atol=3e-2, rtol=3e-2)

    # ---- case 2: exercise V tiling (NV=4), 2 row tiles, temp!=1, beam_search -
    B2, T2, D2, V2, S2 = 16, 8, 64, 512, 32
    x2 = jax.random.normal(keys[4], (B2, T2, D2), dtype=jnp.float32)
    attn2 = jax.random.normal(keys[5], (B2, T2, S2), dtype=jnp.float32)
    enc2 = jax.random.randint(keys[6], (B2, S2), 0, V2, dtype=jnp.int32)
    gen2 = GeneratorPallas(d_model=D2, vocab=V2, hidden_dim=D2, pointer_gen=True,
                           key=keys[7], max_v_tile=128, max_rows_per_tile=64)
    logit2, alpha2 = gen2(x2, attn_dist=attn2, enc_batch_extend_vocab=enc2,
                          temp=2.0, beam_search=True)
    logit2 = jax.block_until_ready(logit2)
    alpha2 = jax.block_until_ready(alpha2)
    enc2_bs = jnp.broadcast_to(enc2[0:1], enc2.shape)   # beam_search semantics
    ref_logit2, ref_alpha2 = _reference(gen2, x2, attn2, enc2_bs, temp=2.0)
    assert jnp.allclose(alpha2, ref_alpha2, atol=1e-5, rtol=1e-5)
    assert jnp.allclose(logit2, ref_logit2, atol=3e-2, rtol=3e-2)

    print("KERNEL_OK")
</pallas_src>

<mosaic_0001>
module attributes {stable_mosaic.version = 11 : i64} {
  func.func @_pointer_gen_kernel(%arg0: i32, %arg1: i32, %arg2: i32, %arg3: memref<16x32xf32, #tpu.memory_space<vmem>>, %arg4: memref<32x64xbf16, #tpu.memory_space<vmem>>, %arg5: memref<1x64xf32, #tpu.memory_space<vmem>>, %arg6: memref<1x32xf32, #tpu.memory_space<vmem>>, %arg7: memref<1x1xf32, #tpu.memory_space<vmem>>, %arg8: memref<16x16xf32, #tpu.memory_space<vmem>>, %arg9: memref<2x16xi32, #tpu.memory_space<vmem>>, %arg10: memref<16x64xf32, #tpu.memory_space<vmem>>, %arg11: memref<16x1xf32, #tpu.memory_space<vmem>>, %arg12: memref<16x1xf32, #tpu.memory_space<vmem>>, %arg13: memref<16x1xf32, #tpu.memory_space<vmem>>, %arg14: memref<16x1xf32, #tpu.memory_space<vmem>>, %arg15: memref<16x16xf32, #tpu.memory_space<vmem>>, %arg16: memref<16x32xbf16, #tpu.memory_space<vmem>>) attributes {dimension_semantics = [#tpu.dimension_semantics<parallel>, #tpu.dimension_semantics<arbitrary>, #tpu.dimension_semantics<arbitrary>], iteration_bounds = array<i64: 1, 2, 1>, scalar_prefetch = 0 : i64, scratch_operands = 5 : i64, tpu.core_type = #tpu.core_type<tc>, window_params = [{transform_indices = @transform_0, window_bounds = array<i64: 16, 32>}, {transform_indices = @transform_1, window_bounds = array<i64: 32, 64>}, {transform_indices = @transform_2, window_bounds = array<i64: 1, 64>}, {pipeline_mode = #tpu.pipeline_mode<synchronous>, transform_indices = @transform_3, window_bounds = array<i64: 1, 32>}, {pipeline_mode = #tpu.pipeline_mode<synchronous>, transform_indices = @transform_4, window_bounds = array<i64: 1, 1>}, {transform_indices = @transform_5, window_bounds = array<i64: 16, 16>}, {transform_indices = @transform_6, window_bounds = array<i64: 2, 16>}, {transform_indices = @transform_7, window_bounds = array<i64: 16, 64>}, {transform_indices = @transform_8, window_bounds = array<i64: 16, 1>}]} {
    %c0_i32 = arith.constant 0 : i32
    %0 = arith.cmpi eq, %arg1, %c0_i32 : i32
    %c0_i32_0 = arith.constant 0 : i32
    %1 = arith.cmpi eq, %arg2, %c0_i32_0 : i32
    %2 = arith.andi %0, %1 : i1
    %3 = arith.extui %2 : i1 to i32
    %c0_i32_1 = arith.constant 0 : i32
    %4 = arith.cmpi ne, %3, %c0_i32_1 : i32
    scf.if %4 {
      %c0_10 = arith.constant 0 : index
      %c0_11 = arith.constant 0 : index
      %17 = vector.load %arg3[%c0_10, %c0_11] : memref<16x32xf32, #tpu.memory_space<vmem>>, vector<16x32xf32>
      %c0_12 = arith.constant 0 : index
      %c0_13 = arith.constant 0 : index
      %18 = vector.load %arg6[%c0_12, %c0_13] : memref<1x32xf32, #tpu.memory_space<vmem>>, vector<1x32xf32>
      %19 = vector.broadcast %18 : vector<1x32xf32> to vector<16x32xf32>
      %20 = arith.mulf %17, %19 : vector<16x32xf32>
      %cst_14 = arith.constant dense<0.000000e+00> : vector<16xf32>
      %21 = vector.multi_reduction <add>, %20, %cst_14 [1] : vector<16x32xf32> to vector<16xf32>
      %22 = vector.shape_cast %21 : vector<16xf32> to vector<16x1xf32>
      %c0_15 = arith.constant 0 : index
      %c0_16 = arith.constant 0 : index
      %23 = vector.load %arg7[%c0_15, %c0_16] : memref<1x1xf32, #tpu.memory_space<vmem>>, vector<1x1xf32>
      %24 = vector.broadcast %23 : vector<1x1xf32> to vector<16x1xf32>
      %25 = arith.addf %22, %24 : vector<16x1xf32>
      %26 = arith.negf %25 : vector<16x1xf32>
      %27 = math.exp %26 : vector<16x1xf32>
      %cst_17 = arith.constant 1.000000e+00 : f32
      %28 = vector.broadcast %cst_17 : f32 to vector<16x1xf32>
      %29 = arith.addf %28, %27 : vector<16x1xf32>
      %30 = arith.divf %28, %29 : vector<16x1xf32>
      %c0_18 = arith.constant 0 : index
      %c0_19 = arith.constant 0 : index
      %31 = vector.load %arg14[%c0_18, %c0_19] : memref<16x1xf32, #tpu.memory_space<vmem>>, vector<16x1xf32>
      tpu.vector_store %arg14[%c0_18, %c0_19], %30 {strides = array<i32>} : memref<16x1xf32, #tpu.memory_space<vmem>>, vector<16x1xf32>,
      %c0_20 = arith.constant 0 : index
      %c0_21 = arith.constant 0 : index
      %32 = vector.load %arg11[%c0_20, %c0_21] : memref<16x1xf32, #tpu.memory_space<vmem>>, vector<16x1xf32>
      tpu.vector_store %arg11[%c0_20, %c0_21], %30 {strides = array<i32>} : memref<16x1xf32, #tpu.memory_space<vmem>>, vector<16x1xf32>,
      %33 = arith.truncf %17 : vector<16x32xf32> to vector<16x32xbf16>
      %c0_22 = arith.constant 0 : index
      %c0_23 = arith.constant 0 : index
      %34 = vector.load %arg16[%c0_22, %c0_23] : memref<16x32xbf16, #tpu.memory_space<vmem>>, vector<16x32xbf16>
      tpu.vector_store %arg16[%c0_22, %c0_23], %33 {strides = array<i32>} : memref<16x32xbf16, #tpu.memory_space<vmem>>, vector<16x32xbf16>,
      %c0_24 = arith.constant 0 : index
      %c0_25 = arith.constant 0 : index
      %35 = vector.load %arg8[%c0_24, %c0_25] : memref<16x16xf32, #tpu.memory_space<vmem>>, vector<16x16xf32>
      %cst_26 = arith.constant dense<0xFF800000> : vector<16xf32>
      %36 = vector.multi_reduction <maximumf>, %35, %cst_26 [1] : vector<16x16xf32> to vector<16xf32>
      %37 = vector.shape_cast %36 : vector<16xf32> to vector<16x1xf32>
      %38 = vector.broadcast %37 : vector<16x1xf32> to vector<16x16xf32>
      %39 = arith.subf %35, %38 : vector<16x16xf32>
      %40 = math.exp %39 : vector<16x16xf32>
      %cst_27 = arith.constant dense<0.000000e+00> : vector<16xf32>
      %41 = vector.multi_reduction <add>, %40, %cst_27 [1] : vector<16x16xf32> to vector<16xf32>
      %42 = vector.shape_cast %41 : vector<16xf32> to vector<16x1xf32>
      %43 = tpu.reciprocal %42 {approx = true} : vector<16x1xf32> -> vector<16x1xf32>
      %cst_28 = arith.constant 1.000000e+00 : f32
      %44 = vector.broadcast %cst_28 : f32 to vector<16x1xf32>
      %45 = arith.subf %44, %30 : vector<16x1xf32>
      %46 = vector.broadcast %43 : vector<16x1xf32> to vector<16x16xf32>
      %47 = arith.mulf %40, %46 : vector<16x16xf32>
      %48 = vector.broadcast %45 : vector<16x1xf32> to vector<16x16xf32>
      %49 = arith.mulf %48, %47 : vector<16x16xf32>
      %c0_29 = arith.constant 0 : index
      %c0_30 = arith.constant 0 : index
      %50 = vector.load %arg15[%c0_29, %c0_30] : memref<16x16xf32, #tpu.memory_space<vmem>>, vector<16x16xf32>
      tpu.vector_store %arg15[%c0_29, %c0_30], %49 {strides = array<i32>} : memref<16x16xf32, #tpu.memory_space<vmem>>, vector<16x16xf32>,
      %cst_31 = arith.constant 0xFF800000 : f32
      %51 = vector.broadcast %cst_31 : f32 to vector<16x1xf32>
      %c0_32 = arith.constant 0 : index
      %c0_33 = arith.constant 0 : index
      %52 = vector.load %arg12[%c0_32, %c0_33] : memref<16x1xf32, #tpu.memory_space<vmem>>, vector<16x1xf32>
      tpu.vector_store %arg12[%c0_32, %c0_33], %51 {strides = array<i32>} : memref<16x1xf32, #tpu.memory_space<vmem>>, vector<16x1xf32>,
      %cst_34 = arith.constant 0.000000e+00 : f32
      %53 = vector.broadcast %cst_34 : f32 to vector<16x1xf32>
      %c0_35 = arith.constant 0 : index
      %c0_36 = arith.constant 0 : index
      %54 = vector.load %arg13[%c0_35, %c0_36] : memref<16x1xf32, #tpu.memory_space<vmem>>, vector<16x1xf32>
      tpu.vector_store %arg13[%c0_35, %c0_36], %53 {strides = array<i32>} : memref<16x1xf32, #tpu.memory_space<vmem>>, vector<16x1xf32>,
    } else {
    }
    %c0 = arith.constant 0 : index
    %c0_2 = arith.constant 0 : index
    %5 = vector.load %arg5[%c0, %c0_2] : memref<1x64xf32, #tpu.memory_space<vmem>>, vector<1x64xf32>
    %c0_3 = arith.constant 0 : index
    %c0_4 = arith.constant 0 : index
    %6 = vector.load %arg16[%c0_3, %c0_4] : memref<16x32xbf16, #tpu.memory_space<vmem>>, vector<16x32xbf16>
    %c0_5 = arith.constant 0 : index
    %c0_6 = arith.constant 0 : index
    %7 = vector.load %arg4[%c0_5, %c0_6] : memref<32x64xbf16, #tpu.memory_space<vmem>>, vector<32x64xbf16>
    %cst = arith.constant dense<0.000000e+00> : vector<16x64xf32>
    %8 = tpu.matmul %6, %7, %cst {dimension_numbers = #tpu.dot_dimension_numbers<[1], [0], [0], [1], [0, 0, 1, 1], [], []>} : vector<16x32xbf16>, vector<32x64xbf16>, vector<16x64xf32> -> vector<16x64xf32>
    %9 = vector.broadcast %5 : vector<1x64xf32> to vector<16x64xf32>
    %10 = arith.addf %8, %9 : vector<16x64xf32>
    %c0_i32_7 = arith.constant 0 : i32
    %11 = arith.cmpi eq, %arg1, %c0_i32_7 : i32
    %12 = arith.extui %11 : i1 to i32
    %c0_i32_8 = arith.constant 0 : i32
    %13 = arith.cmpi ne, %12, %c0_i32_8 : i32
    scf.if %13 {
      %c0_10 = arith.constant 0 : index
      %c0_11 = arith.constant 0 : index
      %17 = vector.load %arg12[%c0_10, %c0_11] : memref<16x1xf32, #tpu.memory_space<vmem>>, vector<16x1xf32>
      %cst_12 = arith.constant dense<0xFF800000> : vector<16xf32>
      %18 = vector.multi_reduction <maximumf>, %10, %cst_12 [1] : vector<16x64xf32> to vector<16xf32>
      %19 = vector.shape_cast %18 : vector<16xf32> to vector<16x1xf32>
      %20 = arith.maximumf %17, %19 : vector<16x1xf32>
      %c0_13 = arith.constant 0 : index
      %c0_14 = arith.constant 0 : index
      %21 = vector.load %arg13[%c0_13, %c0_14] : memref<16x1xf32, #tpu.memory_space<vmem>>, vector<16x1xf32>
      %22 = arith.subf %17, %20 : vector<16x1xf32>
      %23 = math.exp %22 : vector<16x1xf32>
      %24 = arith.mulf %21, %23 : vector<16x1xf32>
      %25 = vector.broadcast %20 : vector<16x1xf32> to vector<16x64xf32>
      %26 = arith.subf %10, %25 : vector<16x64xf32>
      %27 = math.exp %26 : vector<16x64xf32>
      %cst_15 = arith.constant dense<0.000000e+00> : vector<16xf32>
      %28 = vector.multi_reduction <add>, %27, %cst_15 [1] : vector<16x64xf32> to vector<16xf32>
      %29 = vector.shape_cast %28 : vector<16xf32> to vector<16x1xf32>
      %30 = arith.addf %24, %29 : vector<16x1xf32>
      %c0_16 = arith.constant 0 : index
      %c0_17 = arith.constant 0 : index
      %31 = vector.load %arg13[%c0_16, %c0_17] : memref<16x1xf32, #tpu.memory_space<vmem>>, vector<16x1xf32>
      tpu.vector_store %arg13[%c0_16, %c0_17], %30 {strides = array<i32>} : memref<16x1xf32, #tpu.memory_space<vmem>>, vector<16x1xf32>,
      %c0_18 = arith.constant 0 : index
      %c0_19 = arith.constant 0 : index
      %32 = vector.load %arg12[%c0_18, %c0_19] : memref<16x1xf32, #tpu.memory_space<vmem>>, vector<16x1xf32>
      tpu.vector_store %arg12[%c0_18, %c0_19], %20 {strides = array<i32>} : memref<16x1xf32, #tpu.memory_space<vmem>>, vector<16x1xf32>,
    } else {
    }
    %c1_i32 = arith.constant 1 : i32
    %14 = arith.cmpi eq, %arg1, %c1_i32 : i32
    %15 = arith.extui %14 : i1 to i32
    %c0_i32_9 = arith.constant 0 : i32
    %16 = arith.cmpi ne, %15, %c0_i32_9 : i32
    scf.if %16 {
      %c0_10 = arith.constant 0 : index
      %c0_11 = arith.constant 0 : index
      %17 = vector.load %arg12[%c0_10, %c0_11] : memref<16x1xf32, #tpu.memory_space<vmem>>, vector<16x1xf32>
      %c0_12 = arith.constant 0 : index
      %c0_13 = arith.constant 0 : index
      %18 = vector.load %arg13[%c0_12, %c0_13] : memref<16x1xf32, #tpu.memory_space<vmem>>, vector<16x1xf32>
      %19 = math.log %18 : vector<16x1xf32>
      %20 = arith.addf %17, %19 : vector<16x1xf32>
      %c0_14 = arith.constant 0 : index
      %c0_15 = arith.constant 0 : index
      %21 = vector.load %arg14[%c0_14, %c0_15] : memref<16x1xf32, #tpu.memory_space<vmem>>, vector<16x1xf32>
      %22 = vector.broadcast %20 : vector<16x1xf32> to vector<16x64xf32>
      %23 = arith.subf %10, %22 : vector<16x64xf32>
      %24 = math.exp %23 : vector<16x64xf32>
      %25 = vector.broadcast %21 : vector<16x1xf32> to vector<16x64xf32>
      %26 = arith.mulf %25, %24 : vector<16x64xf32>
      %c64_i32 = arith.constant 64 : i32
      %27 = arith.muli %arg2, %c64_i32 : i32
      %28 = tpu.iota {dimensions = array<i32: 0>} : vector<64x16xi32>
      %29 = vector.broadcast %27 : i32 to vector<64x16xi32>
      %30 = arith.addi %28, %29 : vector<64x16xi32>
      %c0_16 = arith.constant 0 : index
      %c0_17 = arith.constant 0 : index
      %31 = vector.load %arg9[%c0_16, %c0_17] : memref<2x16xi32, #tpu.memory_space<vmem>>, vector<1x16xi32>
      %32 = vector.broadcast %31 : vector<1x16xi32> to vector<64x16xi32>
      %33 = arith.cmpi eq, %30, %32 : vector<64x16xi32>
      %34 = arith.extui %33 : vector<64x16xi1> to vector<64x16xi32>
      %35 = arith.sitofp %34 : vector<64x16xi32> to vector<64x16xf32>
      %36 = arith.truncf %35 : vector<64x16xf32> to vector<64x16xbf16>
      %c0_18 = arith.constant 0 : index
      %c0_19 = arith.constant 0 : index
      %37 = vector.load %arg15[%c0_18, %c0_19] : memref<16x16xf32, #tpu.memory_space<vmem>>, vector<8x16xf32>
      %38 = arith.truncf %37 : vector<8x16xf32> to vector<8x16xbf16>
      %cst_20 = arith.constant dense<0.000000e+00> : vector<8x64xf32>
      %39 = tpu.matmul %38, %36, %cst_20 {dimension_numbers = #tpu.dot_dimension_numbers<[1], [1], [0], [0], [0, 0, 1, 0], [], []>} : vector<8x16xbf16>, vector<64x16xbf16>, vector<8x64xf32> -> vector<8x64xf32>
      %40 = vector.extract_strided_slice %26 {offsets = [0, 0], sizes = [8, 64], strides = [1, 1]} : vector<16x64xf32> to vector<8x64xf32>
      %41 = arith.addf %40, %39 : vector<8x64xf32>
      %42 = math.log %41 : vector<8x64xf32>
      %c0_21 = arith.constant 0 : index
      %c0_22 = arith.constant 0 : index
      %43 = vector.load %arg10[%c0_21, %c0_22] : memref<16x64xf32, #tpu.memory_space<vmem>>, vector<8x64xf32>
      tpu.vector_store %arg10[%c0_21, %c0_22], %42 {strides = array<i32>} : memref<16x64xf32, #tpu.memory_space<vmem>>, vector<8x64xf32>,
      %c1 = arith.constant 1 : index
      %c0_23 = arith.constant 0 : index
      %44 = vector.load %arg9[%c1, %c0_23] : memref<2x16xi32, #tpu.memory_space<vmem>>, vector<1x16xi32>
      %45 = vector.broadcast %44 : vector<1x16xi32> to vector<64x16xi32>
      %46 = arith.cmpi eq, %30, %45 : vector<64x16xi32>
      %47 = arith.extui %46 : vector<64x16xi1> to vector<64x16xi32>
      %48 = arith.sitofp %47 : vector<64x16xi32> to vector<64x16xf32>
      %49 = arith.truncf %48 : vector<64x16xf32> to vector<64x16xbf16>
      %c8 = arith.constant 8 : index
      %c0_24 = arith.constant 0 : index
      %50 = vector.load %arg15[%c8, %c0_24] : memref<16x16xf32, #tpu.memory_space<vmem>>, vector<8x16xf32>
      %51 = arith.truncf %50 : vector<8x16xf32> to vector<8x16xbf16>
      %cst_25 = arith.constant dense<0.000000e+00> : vector<8x64xf32>
      %52 = tpu.matmul %51, %49, %cst_25 {dimension_numbers = #tpu.dot_dimension_numbers<[1], [1], [0], [0], [0, 0, 1, 0], [], []>} : vector<8x16xbf16>, vector<64x16xbf16>, vector<8x64xf32> -> vector<8x64xf32>
      %53 = vector.extract_strided_slice %26 {offsets = [8, 0], sizes = [8, 64], strides = [1, 1]} : vector<16x64xf32> to vector<8x64xf32>
      %54 = arith.addf %53, %52 : vector<8x64xf32>
      %55 = math.log %54 : vector<8x64xf32>
      %c8_26 = arith.constant 8 : index
      %c0_27 = arith.constant 0 : index
      %56 = vector.load %arg10[%c8_26, %c0_27] : memref<16x64xf32, #tpu.memory_space<vmem>>, vector<8x64xf32>
      tpu.vector_store %arg10[%c8_26, %c0_27], %55 {strides = array<i32>} : memref<16x64xf32, #tpu.memory_space<vmem>>, vector<8x64xf32>,
    } else {
    }
    return
  }
  func.func @transform_0(%arg0: i32, %arg1: i32, %arg2: i32) -> (i32, i32) {
    %c0_i32 = arith.constant 0 : i32
    %c0_i32_0 = arith.constant 0 : i32
    return %arg0, %c0_i32 : i32, i32
  }
  func.func @transform_1(%arg0: i32, %arg1: i32, %arg2: i32) -> (i32, i32) {
    %c0_i32 = arith.constant 0 : i32
    %c0_i32_0 = arith.constant 0 : i32
    return %c0_i32, %arg2 : i32, i32
  }
  func.func @transform_2(%arg0: i32, %arg1: i32, %arg2: i32) -> (i32, i32) {
    %c0_i32 = arith.constant 0 : i32
    %c0_i32_0 = arith.constant 0 : i32
    return %c0_i32, %arg2 : i32, i32
  }
  func.func @transform_3(%arg0: i32, %arg1: i32, %arg2: i32) -> (i32, i32) {
    %c0_i32 = arith.constant 0 : i32
    %c0_i32_0 = arith.constant 0 : i32
    %c0_i32_1 = arith.constant 0 : i32
    return %c0_i32, %c0_i32_0 : i32, i32
  }
  func.func @transform_4(%arg0: i32, %arg1: i32, %arg2: i32) -> (i32, i32) {
    %c0_i32 = arith.constant 0 : i32
    %c0_i32_0 = arith.constant 0 : i32
    %c0_i32_1 = arith.constant 0 : i32
    return %c0_i32, %c0_i32_0 : i32, i32
  }
  func.func @transform_5(%arg0: i32, %arg1: i32, %arg2: i32) -> (i32, i32) {
    %c0_i32 = arith.constant 0 : i32
    %c0_i32_0 = arith.constant 0 : i32
    return %arg0, %c0_i32 : i32, i32
  }
  func.func @transform_6(%arg0: i32, %arg1: i32, %arg2: i32) -> (i32, i32) {
    %c0_i32 = arith.constant 0 : i32
    %c0_i32_0 = arith.constant 0 : i32
    return %arg0, %c0_i32 : i32, i32
  }
  func.func @transform_7(%arg0: i32, %arg1: i32, %arg2: i32) -> (i32, i32) {
    %0 = arith.muli %arg2, %arg1 : i32
    %c0_i32 = arith.constant 0 : i32
    return %arg0, %0 : i32, i32
  }
  func.func @transform_8(%arg0: i32, %arg1: i32, %arg2: i32) -> (i32, i32) {
    %c0_i32 = arith.constant 0 : i32
    %c0_i32_0 = arith.constant 0 : i32
    return %arg0, %c0_i32 : i32, i32
  }
}

</mosaic_0001>

<llo_original>
// kernel: tpu_custom_call.1
$region0: #{tpu_custom_call.1}
  #allocation0 [shape = 'u32[]', space=smem, size = 0x4, offset = 0x4, fixed_abs, tag = 'smem constant byte address 0x4 - core index']
  #allocation1 [shape = 'u32[72,128]{1,0:T(1,128)}', space=vmem, size = 0x9000, scoped, tag = 'internal scratch']
  #allocation2 [shape = 'f32[16,1]{1,0:T(8,128)}', space=vmem, size = 0x2000, scoped, tag = 'scratch operand']
  #allocation3 [shape = 'f32[16,1]{1,0:T(8,128)}', space=vmem, size = 0x2000, scoped, tag = 'scratch operand']
  #allocation4 [shape = 'f32[16,1]{1,0:T(8,128)}', space=vmem, size = 0x2000, scoped, tag = 'scratch operand']
  #allocation5 [shape = 'f32[16,16]{1,0:T(8,128)}', space=vmem, size = 0x2000, scoped, tag = 'scratch operand']
  #allocation6 [shape = 'bf16[16,32]{1,0:T(8,128)(2,1)}', space=vmem, size = 0x1000, scoped, tag = 'scratch operand']
  #allocation7 [shape = 'f32[1,1]{1,0:T(1,128)S(1)}', space=vmem, size = 0x200, scoped, tag = 'scoped memory for tpu_custom_call.1']
  %s0 = inlined_call_operand.hbm [shape: f32[16,32], index: 0, kind: input, shape index: {}]
  %s1 = inlined_call_operand.hbm [shape: bf16[32,64], index: 1, kind: input, shape index: {}]
  %s2 = inlined_call_operand.vmem [shape: f32[1,64], index: 2, kind: input, shape index: {}]
  %s3 = inlined_call_operand.vmem [shape: f32[1,32], index: 3, kind: input, shape index: {}]
  %s4 = inlined_call_operand.<no memory space> [shape: f32[1,1], index: 4, kind: input, shape index: {}]
  %s5 = inlined_call_operand.hbm [shape: f32[16,16], index: 5, kind: input, shape index: {}]
  %s6 = inlined_call_operand.vmem [shape: s32[2,16], index: 6, kind: input, shape index: {}]
  %s7 = inlined_call_operand.hbm [shape: f32[16,64], index: 7, kind: output, shape index: {0}]
  %s8 = inlined_call_operand.vmem [shape: f32[16,1], index: 8, kind: output, shape index: {1}]
  %9 = xla_tuple %s7, %s8
  %s10 = sld [smem:[#allocation0]]
  $region93: #{tpu_custom_call.1} parent=0
    _
  %s12 = ssub.s32 1, %s10
  %s13 = scalar_select 0, %s12, %s10
  %v14 = vstv %s4
  %15 = vst [vmem:[#allocation7] sm:$0x1] %v14
  $region1: #{tpu_custom_call.1} parent=0
    #allocation8 [shape = 'u8[8192]{0}', space=vmem, size = 0x2000, scoped, tag = 'input window, operand 0, single buffered']
    #allocation9 [shape = 's32[2]{0}', space=sflag, size = 0x8, scoped, tag = 'scoped memory for tpu_custom_call.1']
    #allocation10 [shape = 's32[2]{0}', space=sflag, size = 0x8, scoped, tag = 'scoped memory for tpu_custom_call.1']
    #allocation11 [shape = 'u8[8192]{0}', space=vmem, size = 0x2000, scoped, tag = 'input window, operand 1, single buffered']
    #allocation12 [shape = 's32[1]{0}', space=sflag, size = 0x4, scoped, tag = 'scoped memory for tpu_custom_call.1']
    #allocation13 [shape = 'u8[8192]{0}', space=vmem, size = 0x2000, scoped, tag = 'input window, operand 5, single buffered']
    #allocation14 [shape = 'u8[16384]{0}', space=vmem, size = 0x4000, scoped, tag = 'output window, operand 0']
    %16 = vsyncpa [#allocation9], 0
    %17 = vsyncpa [#allocation12], 0
    %18 = vsyncpa [#allocation10], 0
    %s19 = scalar_lea.sflag [#allocation10], 1
    %20 = vsyncpa %s19, 0
    loop: start=0, step=1, limit=4
    $region2: #{tpu_custom_call.1} parent=1 // loop_pre_header
      _
    $region3: #{tpu_custom_call.1} parent=1 // loop_header
      %s22 = sphi 0, %s26
      %p23 = scmp.ge.s32.totalorder %s22, 4
      %s29 = sphi 0, %s48
      %s30 = sphi 0, %s44
      %s31 = sphi 0, %s40
      %s32 = sphi 0, %s29
      %s33 = sphi 0, %s30
      %s34 = sphi 0, %s31
      %s35 = sphi 0, %s32
      %s36 = sphi 0, %s33
      %s37 = sphi 0, %s34
      %s51 = sphi 0, %s53
      %s54 = sphi 0, %s51
      %s55 = sphi 0, %s54
      %s71 = sphi 0, %s55
      %s77 = sphi 0, %s79
      %s80 = sphi 0, %s77
      %s81 = sphi 0, %s80
      %s97 = sphi 0, %s81
      %s103 = sphi 0, %s105
      %s106 = sphi 0, %s103
      %s107 = sphi 0, %s106
      %s123 = sphi 0, %s107
      %s127 = sphi 0, %s127
      %s129 = sphi 0, %s127
      %s130 = sphi 0, %s129
      %s144 = sphi 0, %s130
      %s148 = sphi 0, %s148
      %s150 = sphi 0, %s148
      %s151 = sphi 0, %s150
      %s165 = sphi 0, %s151
      %s171 = sphi 0, %s173
      %s174 = sphi 0, %s171
      %s175 = sphi 0, %s174
      %s191 = sphi 0, %s175
      %s197 = sphi 0, %s199
      %s200 = sphi 0, %s197
      %s201 = sphi 0, %s200
      %s217 = sphi 0, %s201
      %s227 = sphi 0, %s229
      %s230 = sphi 0, %s227
      %s231 = sphi 0, %s230
      %s247 = sphi 0, %s231
      %s253 = sphi 0, %s255
      %s256 = sphi 0, %s253
      %s257 = sphi 0, %s256
      %s273 = sphi 0, %s257
    $region4: #{tpu_custom_call.1} parent=1 // loop_header_branch
      %25 = sbr.rel (%p23) target = $region8
    $region5: #{tpu_custom_call.1} parent=1 // loop_body
      %s27 = ssub.s32 %s22, 1
      %s28 = ssub.s32 %s22, 2
      %s38 = sadd.s32 1, %s31
      %p39 = scmp.ge.s32.totalorder %s38, 1
      %s40 = scalar_select %p39, 0, %s38
      %s41 = sadd.s32 1, %s30
      %s42 = scalar_select %p39, %s41, %s30
      %p43 = scmp.ge.s32.totalorder %s42, 2
      %s44 = scalar_select %p43, 0, %s42
      %s45 = sadd.s32 1, %s29
      %s46 = scalar_select %p43, %s45, %s29
      %p47 = scmp.ge.s32.totalorder %s46, 1
      %s48 = scalar_select %p47, 0, %s46
      %s49 = ssub.s32 %s29, %s48
      %p50 = scmp.eq.s32.totalorder %s49, 0
      %s52 = sadd.s32 %s51, 1
      %s53 = scalar_select %p50, %s51, %s52
      %p56 = pneg %p50
      %p57 = scmp.eq.s32.totalorder %s22, 1
      %p58 = por %p56, %p57
      %p59 = scmp.ne.s32.totalorder %s51, %s54
      %p60 = scmp.eq.s32.totalorder %s22, 0
      %p61 = por %p59, %p60
      %p62 = scmp.ne.s32.totalorder %s51, %s54
      %p63 = scmp.eq.s32.totalorder %s27, 1
      %p64 = por %p62, %p63
      %p65 = scmp.ne.s32.totalorder %s54, %s55
      %p66 = scmp.eq.s32.totalorder %s27, 0
      %p67 = por %p65, %p66
      %p68 = scmp.ne.s32.totalorder %s54, %s55
      %p69 = scmp.eq.s32.totalorder %s28, 1
      %p70 = por %p68, %p69
      %p72 = scmp.ne.s32.totalorder %s55, %s71
      %p73 = scmp.eq.s32.totalorder %s28, 0
      %p74 = por %p72, %p73
      %s75 = ssub.s32 %s31, %s40
      %p76 = scmp.eq.s32.totalorder %s75, 0
      %s78 = sadd.s32 %s77, 1
      %s79 = scalar_select %p76, %s77, %s78
      %p82 = pneg %p76
      %p83 = scmp.eq.s32.totalorder %s22, 1
      %p84 = por %p82, %p83
      %p85 = scmp.ne.s32.totalorder %s77, %s80
      %p86 = scmp.eq.s32.totalorder %s22, 0
      %p87 = por %p85, %p86
      %p88 = scmp.ne.s32.totalorder %s77, %s80
      %p89 = scmp.eq.s32.totalorder %s27, 1
      %p90 = por %p88, %p89
      %p91 = scmp.ne.s32.totalorder %s80, %s81
      %p92 = scmp.eq.s32.totalorder %s27, 0
      %p93 = por %p91, %p92
      %p94 = scmp.ne.s32.totalorder %s80, %s81
      %p95 = scmp.eq.s32.totalorder %s28, 1
      %p96 = por %p94, %p95
      %p98 = scmp.ne.s32.totalorder %s81, %s97
      %p99 = scmp.eq.s32.totalorder %s28, 0
      %p100 = por %p98, %p99
      %s101 = ssub.s32 %s31, %s40
      %p102 = scmp.eq.s32.totalorder %s101, 0
      %s104 = sadd.s32 %s103, 1
      %s105 = scalar_select %p102, %s103, %s104
      %p108 = pneg %p102
      %p109 = scmp.eq.s32.totalorder %s22, 1
      %p110 = por %p108, %p109
      %p111 = scmp.ne.s32.totalorder %s103, %s106
      %p112 = scmp.eq.s32.totalorder %s22, 0
      %p113 = por %p111, %p112
      %p114 = scmp.ne.s32.totalorder %s103, %s106
      %p115 = scmp.eq.s32.totalorder %s27, 1
      %p116 = por %p114, %p115
      %p117 = scmp.ne.s32.totalorder %s106, %s107
      %p118 = scmp.eq.s32.totalorder %s27, 0
      %p119 = por %p117, %p118
      %p120 = scmp.ne.s32.totalorder %s106, %s107
      %p121 = scmp.eq.s32.totalorder %s28, 1
      %p122 = por %p120, %p121
      %p124 = scmp.ne.s32.totalorder %s107, %s123
      %p125 = scmp.eq.s32.totalorder %s28, 0
      %p126 = por %p124, %p125
      %s128 = sadd.s32 %s127, 1
      %p131 = scmp.eq.s32.totalorder %s22, 1
      %p132 = scmp.ne.s32.totalorder %s127, %s129
      %p133 = scmp.eq.s32.totalorder %s22, 0
      %p134 = por %p132, %p133
      %p135 = scmp.ne.s32.totalorder %s127, %s129
      %p136 = scmp.eq.s32.totalorder %s27, 1
      %p137 = por %p135, %p136
      %p138 = scmp.ne.s32.totalorder %s129, %s130
      %p139 = scmp.eq.s32.totalorder %s27, 0
      %p140 = por %p138, %p139
      %p141 = scmp.ne.s32.totalorder %s129, %s130
      %p142 = scmp.eq.s32.totalorder %s28, 1
      %p143 = por %p141, %p142
      %p145 = scmp.ne.s32.totalorder %s130, %s144
      %p146 = scmp.eq.s32.totalorder %s28, 0
      %p147 = por %p145, %p146
      %s149 = sadd.s32 %s148, 1
      %p152 = scmp.eq.s32.totalorder %s22, 1
      %p153 = scmp.ne.s32.totalorder %s148, %s150
      %p154 = scmp.eq.s32.totalorder %s22, 0
      %p155 = por %p153, %p154
      %p156 = scmp.ne.s32.totalorder %s148, %s150
      %p157 = scmp.eq.s32.totalorder %s27, 1
      %p158 = por %p156, %p157
      %p159 = scmp.ne.s32.totalorder %s150, %s151
      %p160 = scmp.eq.s32.totalorder %s27, 0
      %p161 = por %p159, %p160
      %p162 = scmp.ne.s32.totalorder %s150, %s151
      %p163 = scmp.eq.s32.totalorder %s28, 1
      %p164 = por %p162, %p163
      %p166 = scmp.ne.s32.totalorder %s151, %s165
      %p167 = scmp.eq.s32.totalorder %s28, 0
      %p168 = por %p166, %p167
      %s169 = ssub.s32 %s29, %s48
      %p170 = scmp.eq.s32.totalorder %s169, 0
      %s172 = sadd.s32 %s171, 1
      %s173 = scalar_select %p170, %s171, %s172
      %p176 = pneg %p170
      %p177 = scmp.eq.s32.totalorder %s22, 1
      %p178 = por %p176, %p177
      %p179 = scmp.ne.s32.totalorder %s171, %s174
      %p180 = scmp.eq.s32.totalorder %s22, 0
      %p181 = por %p179, %p180
      %p182 = scmp.ne.s32.totalorder %s171, %s174
      %p183 = scmp.eq.s32.totalorder %s27, 1
      %p184 = por %p182, %p183
      %p185 = scmp.ne.s32.totalorder %s174, %s175
      %p186 = scmp.eq.s32.totalorder %s27, 0
      %p187 = por %p185, %p186
      %p188 = scmp.ne.s32.totalorder %s174, %s175
      %p189 = scmp.eq.s32.totalorder %s28, 1
      %p190 = por %p188, %p189
      %p192 = scmp.ne.s32.totalorder %s175, %s191
      %p193 = scmp.eq.s32.totalorder %s28, 0
      %p194 = por %p192, %p193
      %s195 = ssub.s32 %s29, %s48
      %p196 = scmp.eq.s32.totalorder %s195, 0
      %s198 = sadd.s32 %s197, 1
      %s199 = scalar_select %p196, %s197, %s198
      %p202 = pneg %p196
      %p203 = scmp.eq.s32.totalorder %s22, 1
      %p204 = por %p202, %p203
      %p205 = scmp.ne.s32.totalorder %s197, %s200
      %p206 = scmp.eq.s32.totalorder %s22, 0
      %p207 = por %p205, %p206
      %p208 = scmp.ne.s32.totalorder %s197, %s200
      %p209 = scmp.eq.s32.totalorder %s27, 1
      %p210 = por %p208, %p209
      %p211 = scmp.ne.s32.totalorder %s200, %s201
      %p212 = scmp.eq.s32.totalorder %s27, 0
      %p213 = por %p211, %p212
      %p214 = scmp.ne.s32.totalorder %s200, %s201
      %p215 = scmp.eq.s32.totalorder %s28, 1
      %p216 = por %p214, %p215
      %p218 = scmp.ne.s32.totalorder %s201, %s217
      %p219 = scmp.eq.s32.totalorder %s28, 0
      %p220 = por %p218, %p219
      %s221 = smul.u32 %s31, %s30
      %s222 = smul.u32 %s40, %s44
      %s223 = ssub.s32 %s29, %s48
      %s224 = ssub.s32 %s221, %s222
      %s225 = sor.u32 %s223, %s224
      %p226 = scmp.eq.s32.totalorder %s225, 0
      %s228 = sadd.s32 %s227, 1
      %s229 = scalar_select %p226, %s227, %s228
      %p232 = pneg %p226
      %p233 = scmp.eq.s32.totalorder %s22, 1
      %p234 = por %p232, %p233
      %p235 = scmp.ne.s32.totalorder %s227, %s230
      %p236 = scmp.eq.s32.totalorder %s22, 0
      %p237 = por %p235, %p236
      %p238 = scmp.ne.s32.totalorder %s227, %s230
      %p239 = scmp.eq.s32.totalorder %s27, 1
      %p240 = por %p238, %p239
      %p241 = scmp.ne.s32.totalorder %s230, %s231
      %p242 = scmp.eq.s32.totalorder %s27, 0
      %p243 = por %p241, %p242
      %p244 = scmp.ne.s32.totalorder %s230, %s231
      %p245 = scmp.eq.s32.totalorder %s28, 1
      %p246 = por %p244, %p245
      %p248 = scmp.ne.s32.totalorder %s231, %s247
      %p249 = scmp.eq.s32.totalorder %s28, 0
      %p250 = por %p248, %p249
      %s251 = ssub.s32 %s29, %s48
      %p252 = scmp.eq.s32.totalorder %s251, 0
      %s254 = sadd.s32 %s253, 1
      %s255 = scalar_select %p252, %s253, %s254
      %p258 = pneg %p252
      %p259 = scmp.eq.s32.totalorder %s22, 1
      %p260 = por %p258, %p259
      %p261 = scmp.ne.s32.totalorder %s253, %s256
      %p262 = scmp.eq.s32.totalorder %s22, 0
      %p263 = por %p261, %p262
      %p264 = scmp.ne.s32.totalorder %s253, %s256
      %p265 = scmp.eq.s32.totalorder %s27, 1
      %p266 = por %p264, %p265
      %p267 = scmp.ne.s32.totalorder %s256, %s257
      %p268 = scmp.eq.s32.totalorder %s27, 0
      %p269 = por %p267, %p268
      %p270 = scmp.ne.s32.totalorder %s256, %s257
      %p271 = scmp.eq.s32.totalorder %s28, 1
      %p272 = por %p270, %p271
      %p274 = scmp.ne.s32.totalorder %s257, %s273
      %p275 = scmp.eq.s32.totalorder %s28, 0
      %p276 = por %p274, %p275
      %p277 = scmp.le.s32.totalorder 1, %s22
      %p278 = scmp.lt.s32.totalorder %s22, 3
      %p279 = pnand %p277, %p278
      %p280 = pneg %p279
      // Predicated region
      $region9: #{tpu_custom_call.1} parent=5 // pred_check
        _
      $region10: #{tpu_custom_call.1} parent=5 // pred_check_branch
        %282 = sbr.rel (%p279) target = $region12
      $region11: #{tpu_custom_call.1} parent=5 // pred_region
        %s283 = ssub.s32 %s22, 1
        // Predicated region
        $region13: #{tpu_custom_call.1} parent=11 // pred_check
          %p284 = pneg %p67
        $region14: #{tpu_custom_call.1} parent=11 // pred_check_branch
          %286 = sbr.rel (%p284) target = $region16
        $region15: #{tpu_custom_call.1} parent=11 // pred_region
          %s287 = smul.u32 2, %s32
          %289 = vsyncadd [#allocation9], 0
          %s290 = smul.addr %s287, 8
          %s291 = scalar_lea.hbm %s0, %s290
          %s292 = sshll.u32 %s291, 4
          %s293 = int_to_ptr.hbm [resolvable:$true] %s292
          %s294 = sshll.u32 [#allocation8], 4
          %s295 = int_to_ptr.vmem [resolvable:$true] %s294
          %300 = dma.hbm_to_vmem [thread:$0]  %s293, 256, %s295, [#allocation9], 128, 128, 8
        $region16: #{tpu_custom_call.1} parent=11 // pred_fallthru
          _
        // Predicated region
        $region17: #{tpu_custom_call.1} parent=11 // pred_check
          %p301 = pneg %p93
        $region18: #{tpu_custom_call.1} parent=11 // pred_check_branch
          %303 = sbr.rel (%p301) target = $region20
        $region19: #{tpu_custom_call.1} parent=11 // pred_region
          %305 = vsyncadd [#allocation12], 0
          %s306 = smul.addr %s34, 4
          %s307 = scalar_lea.hbm %s1, %s306
          %s308 = sshll.u32 %s307, 4
          %s309 = int_to_ptr.hbm [resolvable:$true] %s308
          %s310 = sshll.u32 [#allocation11], 4
          %s311 = int_to_ptr.vmem [resolvable:$true] %s310
          %316 = dma.hbm_to_vmem [thread:$0]  %s309, 256, %s311, [#allocation12], 64, 64, 4
        $region20: #{tpu_custom_call.1} parent=11 // pred_fallthru
          _
        // Predicated region
        $region21: #{tpu_custom_call.1} parent=11 // pred_check
          %p317 = pneg %p119
        $region22: #{tpu_custom_call.1} parent=11 // pred_check_branch
          %319 = sbr.rel (%p317) target = $region24
        $region23: #{tpu_custom_call.1} parent=11 // pred_region
          %p320 = scmp.lt.s32.totalorder %s34, 0
          %s321 = scalar_select %p320, %s34, 0
          %s322 = scalar_lea.vmem %s2, %s321
        $region24: #{tpu_custom_call.1} parent=11 // pred_fallthru
          _
        // Predicated region
        $region25: #{tpu_custom_call.1} parent=11 // pred_check
          %p323 = pneg %p140
        $region26: #{tpu_custom_call.1} parent=11 // pred_check_branch
          %325 = sbr.rel (%p323) target = $region28
        $region27: #{tpu_custom_call.1} parent=11 // pred_region
          _
        $region28: #{tpu_custom_call.1} parent=11 // pred_fallthru
          _
        // Predicated region
        $region29: #{tpu_custom_call.1} parent=11 // pred_check
          %p326 = pneg %p161
        $region30: #{tpu_custom_call.1} parent=11 // pred_check_branch
          %328 = sbr.rel (%p326) target = $region32
        $region31: #{tpu_custom_call.1} parent=11 // pred_region
          _
        $region32: #{tpu_custom_call.1} parent=11 // pred_fallthru
          _
        // Predicated region
        $region33: #{tpu_custom_call.1} parent=11 // pred_check
          %p329 = pneg %p187
        $region34: #{tpu_custom_call.1} parent=11 // pred_check_branch
          %331 = sbr.rel (%p329) target = $region36
        $region35: #{tpu_custom_call.1} parent=11 // pred_region
          %s332 = smul.u32 2, %s32
          %334 = vsyncadd [#allocation12], 0
          %s335 = smul.addr %s332, 8
          %s336 = scalar_lea.hbm %s5, %s335
          %s337 = sshll.u32 %s336, 4
          %s338 = int_to_ptr.hbm [resolvable:$true] %s337
          %s339 = sshll.u32 [#allocation13], 4
          %s340 = int_to_ptr.vmem [resolvable:$true] %s339
          %345 = dma.hbm_to_vmem [thread:$0]  %s338, 256, %s340, [#allocation12], 128, 128, 8
        $region36: #{tpu_custom_call.1} parent=11 // pred_fallthru
          _
        // Predicated region
        $region37: #{tpu_custom_call.1} parent=11 // pred_check
          %p346 = pneg %p213
        $region38: #{tpu_custom_call.1} parent=11 // pred_check_branch
          %348 = sbr.rel (%p346) target = $region40
        $region39: #{tpu_custom_call.1} parent=11 // pred_region
          %p349 = scmp.lt.s32.totalorder %s32, 0
          %s350 = scalar_select %p349, %s32, 0
          %s351 = smul.addr %s350, 2
          %s352 = scalar_lea.vmem %s6, %s351
        $region40: #{tpu_custom_call.1} parent=11 // pred_fallthru
          _
      $region12: #{tpu_custom_call.1} parent=5 // pred_fallthru
        _
      %p353 = scmp.lt.s32.totalorder %s22, 2
      // Predicated region
      $region41: #{tpu_custom_call.1} parent=5 // pred_check
        %p354 = pneg %p353
      $region42: #{tpu_custom_call.1} parent=5 // pred_check_branch
        %356 = sbr.rel (%p354) target = $region44
      $region43: #{tpu_custom_call.1} parent=5 // pred_region
        _
      $region44: #{tpu_custom_call.1} parent=5 // pred_fallthru
        _
      %p357 = scmp.le.s32.totalorder 1, %s22
      %p358 = scmp.lt.s32.totalorder %s22, 3
      %p359 = pnand %p357, %p358
      %p360 = pneg %p359
      // Predicated region
      $region45: #{tpu_custom_call.1} parent=5 // pred_check
        _
      $region46: #{tpu_custom_call.1} parent=5 // pred_check_branch
        %362 = sbr.rel (%p359) target = $region48
      $region47: #{tpu_custom_call.1} parent=5 // pred_region
        %s363 = ssub.s32 %s22, 1
        // Predicated region
        $region49: #{tpu_custom_call.1} parent=47 // pred_check
          %p364 = pneg %p67
        $region50: #{tpu_custom_call.1} parent=47 // pred_check_branch
          %366 = sbr.rel (%p364) target = $region52
        $region51: #{tpu_custom_call.1} parent=47 // pred_region
          %368 = dma.done [#allocation9], 256
        $region52: #{tpu_custom_call.1} parent=47 // pred_fallthru
          _
        // Predicated region
        $region53: #{tpu_custom_call.1} parent=47 // pred_check
          %p369 = pneg %p93
        $region54: #{tpu_custom_call.1} parent=47 // pred_check_branch
          %371 = sbr.rel (%p369) target = $region56
        $region55: #{tpu_custom_call.1} parent=47 // pred_region
          %373 = dma.done [#allocation12], 256
        $region56: #{tpu_custom_call.1} parent=47 // pred_fallthru
          _
        // Predicated region
        $region57: #{tpu_custom_call.1} parent=47 // pred_check
          %p374 = pneg %p187
        $region58: #{tpu_custom_call.1} parent=47 // pred_check_branch
          %376 = sbr.rel (%p374) target = $region60
        $region59: #{tpu_custom_call.1} parent=47 // pred_region
          %378 = dma.done [#allocation12], 256
        $region60: #{tpu_custom_call.1} parent=47 // pred_fallthru
          _
        %p379 = pneg %p67
        %p380 = pneg %p64
        %p381 = pneg %p93
        %p382 = pneg %p90
        %p383 = scmp.lt.s32.totalorder %s34, 0
        %s384 = scalar_select %p383, %s34, 0
        %s385 = scalar_lea.vmem %s2, %s384
        %p386 = pneg %p119
        %p387 = pneg %p116
        %p388 = pneg %p140
        %p389 = pneg %p137
        %p390 = pneg %p161
        %p391 = pneg %p158
        %p392 = pneg %p187
        %p393 = pneg %p184
        %p394 = scmp.lt.s32.totalorder %s32, 0
        %s395 = scalar_select %p394, %s32, 0
        %s396 = smul.addr %s395, 2
        %s397 = scalar_lea.vmem %s6, %s396
        %p398 = pneg %p213
        %p399 = pneg %p210
        %p400 = pneg %p243
        %p401 = pneg %p240
        %s402 = sand.u32 %s230, 1
        %s403 = scalar_lea.sflag [#allocation10], %s402
        %s404 = sand.u32 %s230, 1
        %s405 = smul.addr %s404, 16
        %s406 = scalar_lea.vmem [#allocation14], %s405
        %p407 = pneg %p269
        %p408 = pneg %p266
        %s409 = smul.u32 2, %s32
        %p410 = scmp.lt.s32.totalorder %s409, 1
        %s411 = scalar_select %p410, %s409, 1
        %s412 = smul.addr %s411, 8
        %s413 = scalar_lea.vmem %s8, %s412
        %s414 = smul.u32 2, %s32
        %p415 = scmp.lt.s32.totalorder %s34, 0
        %s416 = scalar_select %p415, %s34, 0
        %s417 = scalar_lea.vmem %s2, %s416
        %s418 = smul.u32 2, %s32
        %p419 = scmp.lt.s32.totalorder %s32, 0
        %s420 = scalar_select %p419, %s32, 0
        %s421 = smul.addr %s420, 2
        %s422 = scalar_lea.vmem %s6, %s421
        %s423 = smul.u32 %s34, %s33
        %s424 = smul.u32 2, %s32
        %s425 = smul.u32 2, %s32
        %p426 = scmp.lt.s32.totalorder %s425, 1
        %s427 = scalar_select %p426, %s425, 1
        %s428 = smul.addr %s427, 8
        %s429 = scalar_lea.vmem %s8, %s428
        %s430 = smul.u32 2, %s32
        %p432 = scmp.eq.s32.totalorder %s33, 0
        %p433 = scmp.eq.s32.totalorder %s34, 0
        %p434 = pnand %p432, %p433
        %p435 = pneg %p434
        // Predicated region
        $region61: #{tpu_custom_call.1} parent=47 // pred_check
          _
        $region62: #{tpu_custom_call.1} parent=47 // pred_check_branch
          %437 = sbr.rel (%p434) target = $region64
        $region63: #{tpu_custom_call.1} parent=47 // pred_region
          %v438 = vld [vmem:[#allocation8] sm:$0xff]
          %v439 = vld [vmem:[#allocation8 + $0x8] sm:$0xff]
          %v440 = vld [vmem:[%s3] sm:$0x1]
          %v442 = vperm.slane %v440, 0
          %v444 = vmul.f32 %v438, %v442
          %v445 = vmul.f32 %v439, %v442
          %vm446 = vcmask 261120
          %v447 = vsel %vm446, %v444, 0.0
          %448 = vadd.xlane.f32.xlu0 %v447
          %v449 = vpop.xlane.xlu0 %448
          %v450 = vsel %vm446, %v445, 0.0
          %451 = vadd.xlane.f32.xlu0 %v450
          %v452 = vpop.xlane.xlu0 %451
          %v453 = vld [vmem:[#allocation7] sm:$0x1]
          %v455 = vperm.slane %v453, 0
          %v457 = vadd.f32 %v449, %v455
          %v458 = vadd.f32 %v452, %v455
          %v459 = vxor.u32 %v457, 2147483648
          %v460 = vxor.u32 %v458, 2147483648
          %v461 = vmul.f32 %v459, 1.442695
          %v462 = vpow.pop %v461
          %v463 = vmul.f32 %v460, 1.442695
          %v464 = vpow.pop %v463
          %v465 = vadd.f32 %v462, 1.0
          %v466 = vadd.f32 %v464, 1.0
          %v467 = vrcp.pop %v465
          %v468 = vmul.f32 %v465, %v467
          %v469 = vsub.f32 1.0, %v468
          %v470 = vmul.f32 %v467, %v469
          %v471 = vadd.f32 %v467, %v470
          %vm472 = vweird.f32 %v465
          %vm473 = vweird.f32 %v467
          %vm474 = vmor %vm472, %vm473
          %v475 = vsel %vm474, %v467, %v471
          %v476 = vand.u32 2147483647, %v465
          %vm477 = vcmp.eq.f32.partialorder %v476, 8.507059e+37
          %v478 = vand.u32 %v465, 2147483648
          %v479 = vor.u32 1.1754944e-38, %v478
          %v480 = vsel %vm477, %v479, %v475
          %v481 = vmul.f32 1.0, %v480
          %v482 = vrcp.pop %v466
          %v483 = vmul.f32 %v466, %v482
          %v484 = vsub.f32 1.0, %v483
          %v485 = vmul.f32 %v482, %v484
          %v486 = vadd.f32 %v482, %v485
          %vm487 = vweird.f32 %v466
          %vm488 = vweird.f32 %v482
          %vm489 = vmor %vm487, %vm488
          %v490 = vsel %vm489, %v482, %v486
          %v491 = vand.u32 2147483647, %v466
          %vm492 = vcmp.eq.f32.partialorder %v491, 8.507059e+37
          %v493 = vand.u32 %v466, 2147483648
          %v494 = vor.u32 1.1754944e-38, %v493
          %v495 = vsel %vm492, %v494, %v490
          %v496 = vmul.f32 1.0, %v495
          %vm497 = vcmask 7168
          %498 = vst.msk [vmem:[#allocation4] sm:$0xff] %vm497, %v481
          %499 = vst.msk [vmem:[#allocation4 + $0x8] sm:$0xff] %vm497, %v496
          %500 = vst.msk [vmem:[%s429] sm:$0xff] %vm497, %v481
          %501 = vst.msk [vmem:[%s429 + $0x8] sm:$0xff] %vm497, %v496
          %v502 = vpack.c.bf16 %v438, %v438
          %v503 = vpack.c.bf16 %v439, %v439
          %vm504 = vcmask 257024
          %505 = vst.msk [vmem:[#allocation6] sm:$0xf] %vm504, %v502
          %506 = vst.msk [vmem:[#allocation6 + $0x4] sm:$0xf] %vm504, %v503
          %v507 = vld [vmem:[#allocation13] sm:$0xff]
          %v508 = vld [vmem:[#allocation13 + $0x8] sm:$0xff]
          %vm509 = vcmask 130048
          %v510 = vsel %vm509, %v507, -inf
          %511 = vmax.xlane.f32.xlu0 %v510
          %v512 = vpop.xlane.xlu0 %511
          %v513 = vsel %vm509, %v508, -inf
          %514 = vmax.xlane.f32.xlu0 %v513
          %v515 = vpop.xlane.xlu0 %514
          %v516 = vsub.f32 %v507, %v512
          %v517 = vsub.f32 %v508, %v515
          %v518 = vmul.f32 %v516, 1.442695
          %v519 = vpow.pop %v518
          %v520 = vmul.f32 %v517, 1.442695
          %v521 = vpow.pop %v520
          %v522 = vsel %vm509, %v519, 0.0
          %523 = vadd.xlane.f32.xlu0 %v522
          %v524 = vpop.xlane.xlu0 %523
          %v525 = vsel %vm509, %v521, 0.0
          %526 = vadd.xlane.f32.xlu0 %v525
          %v527 = vpop.xlane.xlu0 %526
          %v528 = vrcp.pop %v524
          %v529 = vrcp.pop %v527
          %v530 = vsub.f32 1.0, %v481
          %v531 = vsub.f32 1.0, %v496
          %v532 = vmul.f32 %v519, %v528
          %v533 = vmul.f32 %v521, %v529
          %535 = vset.pattern.permute.xlu0 0
          %536 = vperm.xlu0 %535, %v530
          %v537 = vpop.permute.xlu0 %536
          %540 = vset.pattern.permute.xlu0 0
          %541 = vperm.xlu0 %540, %v531
          %v542 = vpop.permute.xlu0 %541
          %v544 = vmul.f32 %v537, %v532
          %v545 = vmul.f32 %v542, %v533
          %546 = vst.msk [vmem:[#allocation5] sm:$0xff] %vm509, %v544
          %547 = vst.msk [vmem:[#allocation5 + $0x8] sm:$0xff] %vm509, %v545
          %548 = vst.msk [vmem:[#allocation2] sm:$0xff] %vm497, -inf
          %549 = vst.msk [vmem:[#allocation2 + $0x8] sm:$0xff] %vm497, -inf
          %550 = vst.msk [vmem:[#allocation3] sm:$0xff] %vm497, 0.0
          %551 = vst.msk [vmem:[#allocation3 + $0x8] sm:$0xff] %vm497, 0.0
        $region64: #{tpu_custom_call.1} parent=47 // pred_fallthru
          _
        %v552 = vld [vmem:[%s417] sm:$0x1]
        %v553 = vld [vmem:[#allocation6] sm:$0xf]
        %v554 = vld [vmem:[#allocation6 + $0x4] sm:$0xf]
        %v555 = vld [vmem:[#allocation11] sm:$0xf]
        %v556 = vld [vmem:[#allocation11 + $0x4] sm:$0xf]
        %v557 = vld [vmem:[#allocation11 + $0x8] sm:$0xf]
        %v558 = vld [vmem:[#allocation11 + $0xc] sm:$0xf]
        %v560 = vperm.slane %v552, 0
        %v564 = vunpack.c.l.b16 %v553
        %v565 = vunpack.c.l.b16 %v554
        %v566 = vpack.c.b16 %v565, %v564
        %v571 = vunpack.c.l.b16 %v555
        %v572 = vunpack.c.l.b16 %v556
        %v573 = vunpack.c.l.b16 %v557
        %v574 = vunpack.c.l.b16 %v558
        %v575 = vpack.c.b16 %v572, %v571
        %v576 = vpack.c.b16 %v574, %v573
        %vm579 = vcmask 261120
        %v581 = vsel %vm579, %v566, 0
        %583 = vmatpush.bf16.msra.mxu0 0
        %584 = vmatpush.bf16.msra.mxu0 0
        %585 = vmatpush.bf16.msra.mxu0 0
        %586 = vmatpush.bf16.msra.mxu0 0
        %587 = vmatpush.bf16.msra.mxu0 0
        %588 = vmatpush.bf16.msra.mxu0 0
        %589 = vmatpush.bf16.msra.mxu0 %v576
        %590 = vmatpush.bf16.msra.mxu0 %v575
        %591 = vmatmul.bf16.gmra.mxu0 %v581
        %v592 = vpop.f32.mrf.mxu0
        %v593 = vadd.f32 %v560, %v592
        %v594 = vpop.f32.mrf.mxu0
        %v595 = vadd.f32 %v560, %v594
        %596 = vdwg.mxu0
        // Predicated region
        $region65: #{tpu_custom_call.1} parent=47 // pred_check
          %p597 = pneg %p432
        $region66: #{tpu_custom_call.1} parent=47 // pred_check_branch
          %599 = sbr.rel (%p597) target = $region68
        $region67: #{tpu_custom_call.1} parent=47 // pred_region
          %v600 = vld [vmem:[#allocation2] sm:$0xff]
          %v601 = vld [vmem:[#allocation2 + $0x8] sm:$0xff]
          %vm602 = vcmask 523264
          %v603 = vsel %vm602, %v593, -inf
          %604 = vmax.xlane.f32.xlu0 %v603
          %v605 = vpop.xlane.xlu0 %604
          %v606 = vsel %vm602, %v595, -inf
          %607 = vmax.xlane.f32.xlu0 %v606
          %v608 = vpop.xlane.xlu0 %607
          %v609 = vmax.f32 %v600, %v605
          %v610 = vmax.f32 %v601, %v608
          %v611 = vld [vmem:[#allocation3] sm:$0xff]
          %v612 = vld [vmem:[#allocation3 + $0x8] sm:$0xff]
          %v613 = vsub.f32 %v600, %v609
          %v614 = vsub.f32 %v601, %v610
          %v615 = vmul.f32 %v613, 1.442695
          %v616 = vpow.pop %v615
          %v617 = vmul.f32 %v614, 1.442695
          %v618 = vpow.pop %v617
          %v619 = vmul.f32 %v611, %v616
          %v620 = vmul.f32 %v612, %v618
          %622 = vset.pattern.permute.xlu0 0
          %623 = vperm.xlu0 %622, %v609
          %v624 = vpop.permute.xlu0 %623
          %627 = vset.pattern.permute.xlu0 0
          %628 = vperm.xlu0 %627, %v610
          %v629 = vpop.permute.xlu0 %628
          %v631 = vsub.f32 %v593, %v624
          %v632 = vsub.f32 %v595, %v629
          %v633 = vmul.f32 %v631, 1.442695
          %v634 = vpow.pop %v633
          %v635 = vmul.f32 %v632, 1.442695
          %v636 = vpow.pop %v635
          %v637 = vsel %vm602, %v634, 0.0
          %638 = vadd.xlane.f32.xlu0 %v637
          %v639 = vpop.xlane.xlu0 %638
          %v640 = vsel %vm602, %v636, 0.0
          %641 = vadd.xlane.f32.xlu0 %v640
          %v642 = vpop.xlane.xlu0 %641
          %v643 = vadd.f32 %v619, %v639
          %v644 = vadd.f32 %v620, %v642
          %vm645 = vcmask 7168
          %646 = vst.msk [vmem:[#allocation3] sm:$0xff] %vm645, %v643
          %647 = vst.msk [vmem:[#allocation3 + $0x8] sm:$0xff] %vm645, %v644
          %648 = vst.msk [vmem:[#allocation2] sm:$0xff] %vm645, %v609
          %649 = vst.msk [vmem:[#allocation2 + $0x8] sm:$0xff] %vm645, %v610
        $region68: #{tpu_custom_call.1} parent=47 // pred_fallthru
          _
        %p650 = scmp.eq.s32.totalorder %s33, 1
        // Predicated region
        $region69: #{tpu_custom_call.1} parent=47 // pred_check
          %p651 = pneg %p650
        $region70: #{tpu_custom_call.1} parent=47 // pred_check_branch
          %653 = sbr.rel (%p651) target = $region72
        $region71: #{tpu_custom_call.1} parent=47 // pred_region
          %v654 = vld [vmem:[#allocation2] sm:$0xff]
          %v655 = vld [vmem:[#allocation2 + $0x8] sm:$0xff]
          %v656 = vld [vmem:[#allocation3] sm:$0xff]
          %v657 = vld [vmem:[#allocation3 + $0x8] sm:$0xff]
          %v658 = vlog2.pop %v656
          %v659 = vmul.f32 %v658, 0.6931472
          %v660 = vlog2.pop %v657
          %v661 = vmul.f32 %v660, 0.6931472
          %v662 = vadd.f32 %v654, %v659
          %v663 = vadd.f32 %v655, %v661
          %v664 = vld [vmem:[#allocation4] sm:$0xff]
          %v665 = vld [vmem:[#allocation4 + $0x8] sm:$0xff]
          %667 = vset.pattern.permute.xlu0 0
          %668 = vperm.xlu0 %667, %v662
          %v669 = vpop.permute.xlu0 %668
          %672 = vset.pattern.permute.xlu0 0
          %673 = vperm.xlu0 %672, %v663
          %v674 = vpop.permute.xlu0 %673
          %v676 = vsub.f32 %v593, %v669
          %v677 = vsub.f32 %v595, %v674
          %v678 = vmul.f32 %v676, 1.442695
          %v679 = vpow.pop %v678
          %v680 = vmul.f32 %v677, 1.442695
          %v681 = vpow.pop %v680
          %683 = vset.pattern.permute.xlu0 0
          %684 = vperm.xlu0 %683, %v664
          %v685 = vpop.permute.xlu0 %684
          %688 = vset.pattern.permute.xlu0 0
          %689 = vperm.xlu0 %688, %v665
          %v690 = vpop.permute.xlu0 %689
          %v692 = vmul.f32 %v685, %v679
          %v693 = vmul.f32 %v690, %v681
          %s694 = smul.u32 %s34, 64
          %v695 = vlaneseq
          %v696 = vshrl.u32 %v695, 7
          %v697 = vadd.s32 %v696, 8
          %v698 = vadd.s32 %v696, 16
          %v699 = vadd.s32 %v696, 24
          %v700 = vadd.s32 %v696, 32
          %v701 = vadd.s32 %v696, 40
          %v702 = vadd.s32 %v696, 48
          %v703 = vadd.s32 %v696, 56
          %v704 = vstv %s694
          %v705 = vadd.s32 %v696, %v704
          %v706 = vadd.s32 %v697, %v704
          %v707 = vadd.s32 %v698, %v704
          %v708 = vadd.s32 %v699, %v704
          %v709 = vadd.s32 %v700, %v704
          %v710 = vadd.s32 %v701, %v704
          %v711 = vadd.s32 %v702, %v704
          %v712 = vadd.s32 %v703, %v704
          %v713 = vld [vmem:[%s422] sm:$0x1]
          %v714 = vperm.slane %v713, 0
          %vm715 = vcmp.eq.s32.totalorder %v705, %v714
          %vm716 = vcmp.eq.s32.totalorder %v706, %v714
          %vm717 = vcmp.eq.s32.totalorder %v707, %v714
          %vm718 = vcmp.eq.s32.totalorder %v708, %v714
          %vm719 = vcmp.eq.s32.totalorder %v709, %v714
          %vm720 = vcmp.eq.s32.totalorder %v710, %v714
          %vm721 = vcmp.eq.s32.totalorder %v711, %v714
          %vm722 = vcmp.eq.s32.totalorder %v712, %v714
          %v723 = vsel %vm715, 1, 0
          %v724 = vsel %vm716, 1, 0
          %v725 = vsel %vm717, 1, 0
          %v726 = vsel %vm718, 1, 0
          %v727 = vsel %vm719, 1, 0
          %v728 = vsel %vm720, 1, 0
          %v729 = vsel %vm721, 1, 0
          %v730 = vsel %vm722, 1, 0
          %v731 = vcvt.s32.f32 %v723
          %v732 = vcvt.s32.f32 %v724
          %v733 = vcvt.s32.f32 %v725
          %v734 = vcvt.s32.f32 %v726
          %v735 = vcvt.s32.f32 %v727
          %v736 = vcvt.s32.f32 %v728
          %v737 = vcvt.s32.f32 %v729
          %v738 = vcvt.s32.f32 %v730
          %v739 = vpack.c.bf16 %v732, %v731
          %v740 = vpack.c.bf16 %v734, %v733
          %v741 = vpack.c.bf16 %v736, %v735
          %v742 = vpack.c.bf16 %v738, %v737
          %v743 = vld [vmem:[#allocation5] sm:$0xff]
          %v744 = vpack.c.bf16 %v743, %v743
          %vm745 = vcmask 130048
          %v747 = vsel %vm745, %v744, 0
          %v750 = vsel %vm745, %v739, 0
          %v753 = vsel %vm745, %v740, 0
          %v756 = vsel %vm745, %v741, 0
          %v759 = vsel %vm745, %v742, 0
          %761 = vmatpush.bf16.xpose.msra.mxu0 0
          %762 = vmatpush.bf16.xpose.msra.mxu0 0
          %763 = vmatpush.bf16.xpose.msra.mxu0 0
          %764 = vmatpush.bf16.xpose.msra.mxu0 0
          %765 = vmatpush.bf16.xpose.msra.mxu0 %v759
          %766 = vmatpush.bf16.xpose.msra.mxu0 %v756
          %767 = vmatpush.bf16.xpose.msra.mxu0 %v753
          %768 = vmatpush.bf16.xpose.msra.mxu0 %v750
          %769 = vmatmul.bf16.gmra.mxu0 %v747
          %v770 = vpop.f32.mrf.mxu0
          %v771 = vadd.f32 0.0, %v770
          %v772 = vpop.f32.mrf.mxu0
          %773 = vdwg.mxu0
          %v774 = vadd.f32 %v692, %v771
          %v775 = vlog2.pop %v774
          %v776 = vmul.f32 %v775, 0.6931472
          %vm777 = vcmask 523264
          %778 = vst.msk [vmem:[%s406] sm:$0xff] %vm777, %v776
          %v779 = vld [vmem:[%s422 + $0x1] sm:$0x1]
          %v780 = vperm.slane %v779, 0
          %vm781 = vcmp.eq.s32.totalorder %v705, %v780
          %vm782 = vcmp.eq.s32.totalorder %v706, %v780
          %vm783 = vcmp.eq.s32.totalorder %v707, %v780
          %vm784 = vcmp.eq.s32.totalorder %v708, %v780
          %vm785 = vcmp.eq.s32.totalorder %v709, %v780
          %vm786 = vcmp.eq.s32.totalorder %v710, %v780
          %vm787 = vcmp.eq.s32.totalorder %v711, %v780
          %vm788 = vcmp.eq.s32.totalorder %v712, %v780
          %v789 = vsel %vm781, 1, 0
          %v790 = vsel %vm782, 1, 0
          %v791 = vsel %vm783, 1, 0
          %v792 = vsel %vm784, 1, 0
          %v793 = vsel %vm785, 1, 0
          %v794 = vsel %vm786, 1, 0
          %v795 = vsel %vm787, 1, 0
          %v796 = vsel %vm788, 1, 0
          %v797 = vcvt.s32.f32 %v789
          %v798 = vcvt.s32.f32 %v790
          %v799 = vcvt.s32.f32 %v791
          %v800 = vcvt.s32.f32 %v792
          %v801 = vcvt.s32.f32 %v793
          %v802 = vcvt.s32.f32 %v794
          %v803 = vcvt.s32.f32 %v795
          %v804 = vcvt.s32.f32 %v796
          %v805 = vpack.c.bf16 %v798, %v797
          %v806 = vpack.c.bf16 %v800, %v799
          %v807 = vpack.c.bf16 %v802, %v801
          %v808 = vpack.c.bf16 %v804, %v803
          %v809 = vld [vmem:[#allocation5 + $0x8] sm:$0xff]
          %v810 = vpack.c.bf16 %v809, %v809
          %v812 = vsel %vm745, %v810, 0
          %v815 = vsel %vm745, %v805, 0
          %v818 = vsel %vm745, %v806, 0
          %v821 = vsel %vm745, %v807, 0
          %v824 = vsel %vm745, %v808, 0
          %826 = vmatpush.bf16.xpose.msra.mxu0 0
          %827 = vmatpush.bf16.xpose.msra.mxu0 0
          %828 = vmatpush.bf16.xpose.msra.mxu0 0
          %829 = vmatpush.bf16.xpose.msra.mxu0 0
          %830 = vmatpush.bf16.xpose.msra.mxu0 %v824
          %831 = vmatpush.bf16.xpose.msra.mxu0 %v821
          %832 = vmatpush.bf16.xpose.msra.mxu0 %v818
          %833 = vmatpush.bf16.xpose.msra.mxu0 %v815
          %834 = vmatmul.bf16.gmra.mxu0 %v812
          %v835 = vpop.f32.mrf.mxu0
          %v836 = vadd.f32 0.0, %v835
          %v837 = vpop.f32.mrf.mxu0
          %838 = vdwg.mxu0
          %v839 = vadd.f32 %v693, %v836
          %v840 = vlog2.pop %v839
          %v841 = vmul.f32 %v840, 0.6931472
          %842 = vst.msk [vmem:[%s406 + $0x8] sm:$0xff] %vm777, %v841
        $region72: #{tpu_custom_call.1} parent=47 // pred_fallthru
          _
        %s843 = sand.u32 %s230, 1
        %s844 = scalar_lea.sflag [#allocation10], %s843
        %s845 = sand.u32 %s230, 1
        %s846 = smul.addr %s845, 16
        %s847 = scalar_lea.vmem [#allocation14], %s846
        %s848 = smul.u32 2, %s32
        %p849 = scmp.lt.s32.totalorder %s848, 1
        %s850 = scalar_select %p849, %s848, 1
        %s851 = smul.addr %s850, 8
        %s852 = scalar_lea.vmem %s8, %s851
        // Predicated region
        $region73: #{tpu_custom_call.1} parent=47 // pred_check
          %p853 = pneg %p240
        $region74: #{tpu_custom_call.1} parent=47 // pred_check_branch
          %855 = sbr.rel (%p853) target = $region76
        $region75: #{tpu_custom_call.1} parent=47 // pred_region
          %s856 = smul.u32 %s34, %s33
          %s857 = smul.u32 2, %s32
          %859 = vsyncadd %s844, 0
          %s860 = sadd.s32 %s856, %s857
          %s861 = smul.addr %s860, 8
          %s862 = scalar_lea.hbm %s7, %s861
          %s863 = sshll.u32 %s847, 4
          %s864 = int_to_ptr.vmem [resolvable:$true] %s863
          %s865 = sshll.u32 %s862, 4
          %s866 = int_to_ptr.hbm [resolvable:$true] %s865
          %871 = dma.vmem_to_hbm [thread:$0]  %s864, 256, %s866, %s844, 128, 128, 8
        $region76: #{tpu_custom_call.1} parent=47 // pred_fallthru
          _
        // Predicated region
        $region77: #{tpu_custom_call.1} parent=47 // pred_check
          %p872 = pneg %p266
        $region78: #{tpu_custom_call.1} parent=47 // pred_check_branch
          %874 = sbr.rel (%p872) target = $region80
        $region79: #{tpu_custom_call.1} parent=47 // pred_region
          %s875 = smul.u32 2, %s32
        $region80: #{tpu_custom_call.1} parent=47 // pred_fallthru
          _
        // Predicated region
        $region81: #{tpu_custom_call.1} parent=47 // pred_check
          %p876 = pneg %p266
        $region82: #{tpu_custom_call.1} parent=47 // pred_check_branch
          %878 = sbr.rel (%p876) target = $region84
        $region83: #{tpu_custom_call.1} parent=47 // pred_region
          %s879 = smul.u32 2, %s32
          %p880 = scmp.lt.s32.totalorder %s879, 1
          %s881 = scalar_select %p880, %s879, 1
          %s882 = smul.addr %s881, 8
          %s883 = scalar_lea.vmem %s8, %s882
        $region84: #{tpu_custom_call.1} parent=47 // pred_fallthru
          _
      $region48: #{tpu_custom_call.1} parent=5 // pred_fallthru
        _
      %p884 = scmp.le.s32.totalorder 2, %s22
      // Predicated region
      $region85: #{tpu_custom_call.1} parent=5 // pred_check
        %p885 = pneg %p884
      $region86: #{tpu_custom_call.1} parent=5 // pred_check_branch
        %887 = sbr.rel (%p885) target = $region88
      $region87: #{tpu_custom_call.1} parent=5 // pred_region
        %s888 = ssub.s32 %s22, 2
        // Predicated region
        $region89: #{tpu_custom_call.1} parent=87 // pred_check
          %p889 = pneg %p246
        $region90: #{tpu_custom_call.1} parent=87 // pred_check_branch
          %891 = sbr.rel (%p889) target = $region92
        $region91: #{tpu_custom_call.1} parent=87 // pred_region
          %s892 = sand.u32 %s231, 1
          %s893 = scalar_lea.sflag [#allocation10], %s892
          %s894 = sand.u32 %s231, 1
          %s895 = smul.addr %s894, 16
          %s896 = scalar_lea.vmem [#allocation14], %s895
          %898 = dma.done %s893, 256
        $region92: #{tpu_custom_call.1} parent=87 // pred_fallthru
          _
      $region88: #{tpu_custom_call.1} parent=5 // pred_fallthru
        _
    $region6: #{tpu_custom_call.1} parent=1 // loop_footer
      %s26 = sadd.s32 1, %s22
    $region7: #{tpu_custom_call.1} parent=1 // loop_footer_branch
      %21 = sbr.rel target = $region3
    $region8: #{tpu_custom_call.1} parent=1 // loop_exit
      _
    %899 = vsyncpa [#allocation9], 1
    %s900 = scalar_lea.sflag [#allocation9], 1
    %901 = vsyncpa %s900, 1
    %902 = vsyncpa [#allocation12], 1
    %903 = vsyncpa [#allocation10], 1
    %s904 = scalar_lea.sflag [#allocation10], 1
    %905 = vsyncpa %s904, 1

</llo_original>
